<compile_context>
chip_gen: v7x
topology: tpu7x:2x2x1
jax: 0.10.0
libtpu: 0.0.40
codegen_flags: <defaults>
</compile_context>

<pallas_src>
import functools
import math

import jax
import jax.numpy as jnp
from jax import lax
from jax.experimental import pallas as pl
from jax.experimental.pallas import tpu as pltpu


def _round_up(x, m):
    return ((x + m - 1) // m) * m


def _vmem_limit_bytes():
    """Generation-aware scoped-VMEM limit: ~48 MiB on v7x (64 MiB physical per TC),
    64 MiB on v5e/v6e (128 MiB physical)."""
    try:
        cap = int(pltpu.get_tpu_info().vmem_capacity_bytes)
    except Exception:
        return 48 * 1024 * 1024          # safe on every generation
    if cap <= 64 * 1024 * 1024:          # v7x
        return 48 * 1024 * 1024
    return 64 * 1024 * 1024              # v5e / v6e


def _decode_hw_tile(n_blk, d, hw, vmem_limit):
    """Largest HW tile (multiple of 256, <= 8192) whose per-step streams fit in ~60%
    of the VMEM limit: double-buffered bf16 feat + bf16 masks + ~3 f32 (Nb,T)
    intermediates (mask_logits, sigmoid, hard/where)."""
    budget = int(vmem_limit * 0.6)
    per_col = 2 * d * 2 + 2 * n_blk * 2 + 3 * n_blk * 4
    cap = budget // max(per_col, 1)
    cap = max(256, min(8192, (cap // 256) * 256))
    return min(cap, _round_up(hw, 256))


# ---------------------------------------------------------------------------
# Kernel 1: image normalization  (SparseInst.normalizer)
# ---------------------------------------------------------------------------
def _normalize_kernel(img_ref, inv_std_ref, scaled_mean_ref, out_ref):
    # img_ref: (1, C, T); inv_std/scaled_mean: (C, 1).  Single mul+sub per element.
    out_ref[0] = img_ref[0] * inv_std_ref[...] - scaled_mean_ref[...]


def normalize_images(images, pixel_mean, pixel_std, hw_tile=None):
    """(image - pixel_mean) / pixel_std.  images: (B, C, HW) f32."""
    B, C, HW = images.shape
    if hw_tile is None:
        hw_tile = min(8192, _round_up(HW, 128))
    hw_tile = _round_up(hw_tile, 128)
    HW_pad = _round_up(HW, hw_tile)
    if HW_pad != HW:
        images = jnp.pad(images, ((0, 0), (0, 0), (0, HW_pad - HW)))
    inv_std = (1.0 / pixel_std).astype(jnp.float32)
    scaled_mean = (pixel_mean * inv_std).astype(jnp.float32)
    out = pl.pallas_call(
        _normalize_kernel,
        out_shape=jax.ShapeDtypeStruct((B, C, HW_pad), jnp.float32),
        grid=(B, HW_pad // hw_tile),
        in_specs=[
            pl.BlockSpec((1, C, hw_tile), lambda b, h: (b, 0, h)),
            pl.BlockSpec((C, 1), lambda b, h: (0, 0)),
            pl.BlockSpec((C, 1), lambda b, h: (0, 0)),
        ],
        out_specs=pl.BlockSpec((1, C, hw_tile), lambda b, h: (b, 0, h)),
        compiler_params=pltpu.CompilerParams(
            dimension_semantics=("parallel", "parallel"),
            vmem_limit_bytes=_vmem_limit_bytes()),
    )(images, inv_std, scaled_mean)
    return out[..., :HW]


# ---------------------------------------------------------------------------
# Kernel 2 (fused): instance-mask matmul + sigmoid + score fusion + rescoring_mask
#   (SparseInst.get_isntance_mask with is_norm=True, SparseInst.inference,
#    rescoring_mask)
# ---------------------------------------------------------------------------
def _fused_decode_kernel(logit_thr, hw_valid,
                         kern_ref, feat_ref, logits_ref, obj_ref,
                         scores_ref, labels_ref, masks_ref,
                         knorm_ref, num_ref, den_ref):
    hw = pl.program_id(2)
    last = pl.num_programs(2) - 1
    tile = feat_ref.shape[-1]

    @pl.when(hw == 0)
    def _init():
        # L2-normalize the instance kernels ONCE per (batch, n-block); keep them
        # resident (bf16) in VMEM scratch across the HW sweep.
        k = kern_ref[0]                                            # (Nb, D) f32
        a_n = jnp.sqrt(jnp.sum(k * k, axis=-1, keepdims=True))     # ||v||, dim=-1
        k = k / jnp.maximum(a_n, 1e-8)                             # clamp(min=1e-8)
        knorm_ref[...] = k.astype(jnp.bfloat16)
        num_ref[...] = jnp.zeros_like(num_ref)
        den_ref[...] = jnp.zeros_like(den_ref)

    # mask logits for this HW tile: (Nb, D) @ (D, T) on the MXU, bf16 in / f32 acc.
    mask_logits = jnp.dot(knorm_ref[...], feat_ref[0],
                          preferred_element_type=jnp.float32)      # (Nb, T) f32
    m = jax.nn.sigmoid(mask_logits)                                # f32 (EUP)

    # Hard mask straight from the logits: sigmoid(x) > th  <=>  x > logit(th).
    # Avoids serializing the VPU compares behind the EUP sigmoid.
    hard = mask_logits > logit_thr
    if hw_valid % tile != 0:
        # last tile carries zero-padded columns: keep them out of num/den
        cols = lax.broadcasted_iota(jnp.int32, mask_logits.shape, 1)
        hard = jnp.logical_and(hard, hw * tile + cols < hw_valid)
    num_ref[...] += jnp.sum(jnp.where(hard, m, 0.0), axis=-1, keepdims=True)  # (Nb,1)
    den_ref[...] += jnp.sum(hard.astype(jnp.float32), axis=-1, keepdims=True)

    # sigmoid masks go straight to HBM in bf16 (largest output stream, halved)
    masks_ref[0] = m.astype(masks_ref.dtype)

    @pl.when(hw == last)
    def _finalize():
        # pred_scores = sqrt(sigmoid(pred_logits) * sigmoid(pred_scores_objectness))
        cls_scores = jax.nn.sigmoid(logits_ref[0])                 # (Nb, C)
        obj = jax.nn.sigmoid(obj_ref[0])                           # (Nb, 1)
        fused = jnp.sqrt(cls_scores * obj)                         # (Nb, C)
        # scores, labels = fused.max(dim=-1)  (first index at ties, like torch.max)
        max_v = jnp.max(fused, axis=-1, keepdims=True)             # (Nb, 1)
        ids = lax.broadcasted_iota(jnp.int32, fused.shape, 1)
        labels = jnp.min(jnp.where(fused >= max_v, ids, jnp.int32(2 ** 30)),
                         axis=-1, keepdims=True)                   # (Nb, 1)
        rescale = num_ref[...] / (den_ref[...] + 1e-6)             # rescoring_mask
        scores_ref[0] = max_v * rescale
        labels_ref[0] = labels


def sparseinst_decode_and_score(inst_kernels, encode_feat_flat, pred_logits,
                                pred_objectness, mask_threshold,
                                hw_tile=None, n_tile=None):
    B, N, D = inst_kernels.shape
    _, _, HW = encode_feat_flat.shape
    _, _, C = pred_logits.shape

    vmem_limit = _vmem_limit_bytes()

    # Pad instances to a multiple of 16 (bf16 sublane pack / MXU-M utilization).
    N_pad = _round_up(max(N, 16), 16)
    if n_tile is None:
        if B == 1 and N_pad >= 32:
            # v7x has 2 TensorCores; with B == 1, split instances across cores.
            N_pad = _round_up(N_pad, 32)
            n_tile = N_pad // 2
        else:
            n_tile = N_pad
    n_tile = _round_up(n_tile, 16)
    N_pad = _round_up(N_pad, n_tile)

    if hw_tile is None:
        hw_tile = _decode_hw_tile(n_tile, D, HW, vmem_limit)
    hw_tile = _round_up(hw_tile, 128)
    HW_pad = _round_up(HW, hw_tile)

    def pad_n(x):
        return jnp.pad(x, ((0, 0), (0, N_pad - N), (0, 0))) if N_pad != N else x

    kern_p = pad_n(inst_kernels.astype(jnp.float32))
    logits_p = pad_n(pred_logits.astype(jnp.float32))
    obj_p = pad_n(pred_objectness.astype(jnp.float32))
    feat_bf = encode_feat_flat.astype(jnp.bfloat16)   # halve the dominant DMA stream
    if HW_pad != HW:
        feat_bf = jnp.pad(feat_bf, ((0, 0), (0, 0), (0, HW_pad - HW)))

    mt = float(mask_threshold)
    logit_thr = float(math.log(mt / (1.0 - mt)))
    kernel = functools.partial(_fused_decode_kernel, logit_thr, HW)

    scores, labels, masks = pl.pallas_call(
        kernel,
        out_shape=(
            jax.ShapeDtypeStruct((B, N_pad, 1), jnp.float32),      # rescored scores
            jax.ShapeDtypeStruct((B, N_pad, 1), jnp.int32),        # labels
            jax.ShapeDtypeStruct((B, N_pad, HW_pad), jnp.bfloat16),  # sigmoid masks
        ),
        grid_spec=pltpu.PrefetchScalarGridSpec(
            num_scalar_prefetch=0,
            grid=(B, N_pad // n_tile, HW_pad // hw_tile),
            in_specs=[
                pl.BlockSpec((1, n_tile, D), lambda b, n, h: (b, n, 0)),
                pl.BlockSpec((1, D, hw_tile), lambda b, n, h: (b, 0, h)),
                pl.BlockSpec((1, n_tile, C), lambda b, n, h: (b, n, 0)),
                pl.BlockSpec((1, n_tile, 1), lambda b, n, h: (b, n, 0)),
            ],
            out_specs=(
                pl.BlockSpec((1, n_tile, 1), lambda b, n, h: (b, n, 0)),
                pl.BlockSpec((1, n_tile, 1), lambda b, n, h: (b, n, 0)),
                pl.BlockSpec((1, n_tile, hw_tile), lambda b, n, h: (b, n, h)),
            ),
            scratch_shapes=[
                pltpu.VMEM((n_tile, D), jnp.bfloat16),   # resident normalized kernels
                pltpu.VMEM((n_tile, 1), jnp.float32),    # num accumulator
                pltpu.VMEM((n_tile, 1), jnp.float32),    # den accumulator
            ],
        ),
        compiler_params=pltpu.CompilerParams(
            dimension_semantics=("parallel", "parallel", "arbitrary"),
            vmem_limit_bytes=vmem_limit),
    )(kern_p, feat_bf, logits_p, obj_p)
    return scores[:, :N, 0], labels[:, :N, 0], masks[:, :N, :HW]


# ---------------------------------------------------------------------------
if __name__ == "__main__":
    B, Cimg, H, W = 2, 3, 40, 40      # input image (NCHW)
    Hm = Wm = 20                      # mask-feature resolution; HW=400 exercises padding
    D = 32                            # embedding / kernel dim
    N = 8                             # instance queries
    NUM_CLASSES = 16
    CLS_THRESHOLD = 0.005
    MASK_THRESHOLD = 0.45

    key = jax.random.PRNGKey(0)
    k_img, k_enc, k_kern, k_cls, k_obj = jax.random.split(key, 5)

    image = jax.random.uniform(k_img, (B, Cimg, H, W), jnp.float32) * 255.0
    pixel_mean = jnp.array([123.675, 116.28, 103.53], jnp.float32).reshape(3, 1)
    pixel_std = jnp.array([58.395, 57.12, 57.375], jnp.float32).reshape(3, 1)

    # --- preprocess_inputs / normalizer (Pallas, HW-tiled) ---
    img_norm = normalize_images(image.reshape(B, Cimg, H * W), pixel_mean, pixel_std)
    img_norm = img_norm.reshape(B, Cimg, H, W)

    # TODO(synk): build_backbone / build_sparse_inst_encoder / build_sparse_inst_decoder
    # are external registry components; approximated here with deterministic
    # plain-JAX linear projections that produce the decoder outputs.
    pooled = img_norm.reshape(B, Cimg, Hm, 2, Wm, 2).mean(axis=(3, 5))   # (B,3,Hm,Wm)
    w_enc = jax.random.normal(k_enc, (Cimg, D), jnp.float32) * 0.1
    encode_feat = jnp.einsum("bchw,cd->bdhw", pooled, w_enc)             # (B,D,Hm,Wm)
    gap = encode_feat.mean(axis=(2, 3))                                  # (B,D)
    w_kern = jax.random.normal(k_kern, (D, N * D), jnp.float32) * 0.1
    inst_kernels = (gap @ w_kern).reshape(B, N, D)                       # (B,N,D)
    w_cls = jax.random.normal(k_cls, (D, N * NUM_CLASSES), jnp.float32) * 0.1
    pred_logits = (gap @ w_cls).reshape(B, N, NUM_CLASSES)               # (B,N,C)
    w_obj = jax.random.normal(k_obj, (D, N), jnp.float32) * 0.1
    pred_objectness = (gap @ w_obj).reshape(B, N, 1)                     # (B,N,1)

    # --- fused decoder mask branch + inference score fusion + rescoring (Pallas) ---
    # hw_tile=128 exercises the multi-tile accumulator path and the padded last tile.
    scores, labels, masks_sig = sparseinst_decode_and_score(
        inst_kernels, encode_feat.reshape(B, D, Hm * Wm),
        pred_logits, pred_objectness, MASK_THRESHOLD, hw_tile=128)

    keep = scores > CLS_THRESHOLD    # data-dependent filtering stays in plain JAX
    # TODO(synk): F.interpolate bilinear upsample to the original image size and the
    # dynamic-shape instance selection / Instances / BitMasks containers have no
    # clean Pallas equivalent.
    jax.block_until_ready((img_norm, scores, labels, masks_sig, keep))

    # --- lightweight correctness check vs. a pure-JAX reference that mirrors the
    #     kernel's bf16 numerics (bf16 kernels/feat, f32 accumulate) ---
    nrm = jnp.sqrt(jnp.sum(inst_kernels * inst_kernels, axis=-1, keepdims=True))
    knorm = (inst_kernels / jnp.maximum(nrm, 1e-8)).astype(jnp.bfloat16)
    feat_bf = encode_feat.reshape(B, D, Hm * Wm).astype(jnp.bfloat16)
    ml_ref = jnp.einsum("bnd,bdh->bnh", knorm, feat_bf,
                        preferred_element_type=jnp.float32)
    m_ref = jax.nn.sigmoid(ml_ref)
    hard_ref = (m_ref > MASK_THRESHOLD).astype(jnp.float32)
    resc_ref = jnp.sum(hard_ref * m_ref, -1) / (jnp.sum(hard_ref, -1) + 1e-6)
    fused_ref = jnp.sqrt(jax.nn.sigmoid(pred_logits) * jax.nn.sigmoid(pred_objectness))
    scores_ref = jnp.max(fused_ref, axis=-1) * resc_ref
    norm_ref = (image.reshape(B, Cimg, H * W) - pixel_mean) / pixel_std

    assert bool(jnp.allclose(img_norm.reshape(B, Cimg, -1), norm_ref,
                             rtol=1e-5, atol=1e-5))
    assert bool(jnp.allclose(masks_sig.astype(jnp.float32), m_ref, atol=1.5e-2))
    assert bool(jnp.allclose(scores, scores_ref, rtol=5e-2, atol=2e-2))
    print("KERNEL_OK")
</pallas_src>

<mosaic_0001>
module attributes {stable_mosaic.version = 11 : i64} {
  func.func @_normalize_kernel(%arg0: i32, %arg1: i32, %arg2: memref<1x3x1664xf32, #tpu.memory_space<vmem>>, %arg3: memref<3x1xf32, #tpu.memory_space<vmem>>, %arg4: memref<3x1xf32, #tpu.memory_space<vmem>>, %arg5: memref<1x3x1664xf32, #tpu.memory_space<vmem>>) attributes {dimension_semantics = [#tpu.dimension_semantics<parallel>, #tpu.dimension_semantics<parallel>], iteration_bounds = array<i64: 2, 1>, scalar_prefetch = 0 : i64, scratch_operands = 0 : i64, tpu.core_type = #tpu.core_type<tc>, window_params = [{transform_indices = @transform_0, window_bounds = array<i64: 1, 3, 1664>}, {pipeline_mode = #tpu.pipeline_mode<synchronous>, transform_indices = @transform_1, window_bounds = array<i64: 3, 1>}, {pipeline_mode = #tpu.pipeline_mode<synchronous>, transform_indices = @transform_2, window_bounds = array<i64: 3, 1>}, {transform_indices = @transform_3, window_bounds = array<i64: 1, 3, 1664>}]} {
    %c0 = arith.constant 0 : index
    %c0_0 = arith.constant 0 : index
    %c0_1 = arith.constant 0 : index
    %0 = vector.load %arg2[%c0, %c0_0, %c0_1] : memref<1x3x1664xf32, #tpu.memory_space<vmem>>, vector<1x3x1664xf32>
    %1 = vector.shape_cast %0 : vector<1x3x1664xf32> to vector<3x1664xf32>
    %c0_2 = arith.constant 0 : index
    %c0_3 = arith.constant 0 : index
    %2 = vector.load %arg3[%c0_2, %c0_3] : memref<3x1xf32, #tpu.memory_space<vmem>>, vector<3x1xf32>
    %3 = vector.broadcast %2 : vector<3x1xf32> to vector<3x1664xf32>
    %4 = arith.mulf %1, %3 : vector<3x1664xf32>
    %c0_4 = arith.constant 0 : index
    %c0_5 = arith.constant 0 : index
    %5 = vector.load %arg4[%c0_4, %c0_5] : memref<3x1xf32, #tpu.memory_space<vmem>>, vector<3x1xf32>
    %6 = vector.broadcast %5 : vector<3x1xf32> to vector<3x1664xf32>
    %7 = arith.subf %4, %6 : vector<3x1664xf32>
    %c0_6 = arith.constant 0 : index
    %c0_7 = arith.constant 0 : index
    %c0_8 = arith.constant 0 : index
    %8 = vector.load %arg5[%c0_6, %c0_7, %c0_8] : memref<1x3x1664xf32, #tpu.memory_space<vmem>>, vector<1x3x1664xf32>
    %9 = vector.shape_cast %8 : vector<1x3x1664xf32> to vector<3x1664xf32>
    %10 = vector.shape_cast %7 : vector<3x1664xf32> to vector<1x3x1664xf32>
    tpu.vector_store %arg5[%c0_6, %c0_7, %c0_8], %10 {strides = array<i32>} : memref<1x3x1664xf32, #tpu.memory_space<vmem>>, vector<1x3x1664xf32>,
    return
  }
  func.func @transform_0(%arg0: i32, %arg1: i32) -> (i32, i32, i32) {
    %c0_i32 = arith.constant 0 : i32
    %c0_i32_0 = arith.constant 0 : i32
    return %arg0, %c0_i32, %arg1 : i32, i32, i32
  }
  func.func @transform_1(%arg0: i32, %arg1: i32) -> (i32, i32) {
    %c0_i32 = arith.constant 0 : i32
    %c0_i32_0 = arith.constant 0 : i32
    %c0_i32_1 = arith.constant 0 : i32
    return %c0_i32, %c0_i32_0 : i32, i32
  }
  func.func @transform_2(%arg0: i32, %arg1: i32) -> (i32, i32) {
    %c0_i32 = arith.constant 0 : i32
    %c0_i32_0 = arith.constant 0 : i32
    %c0_i32_1 = arith.constant 0 : i32
    return %c0_i32, %c0_i32_0 : i32, i32
  }
  func.func @transform_3(%arg0: i32, %arg1: i32) -> (i32, i32, i32) {
    %c0_i32 = arith.constant 0 : i32
    %c0_i32_0 = arith.constant 0 : i32
    return %arg0, %c0_i32, %arg1 : i32, i32, i32
  }
}

</mosaic_0001>

<llo_original>
// kernel: tpu_custom_call.1
$region0: #{tpu_custom_call.1}
  #allocation0 [shape = 'u32[]', space=smem, size = 0x4, offset = 0x4, fixed_abs, tag = 'smem constant byte address 0x4 - core index']
  #allocation1 [shape = 'u32[144,128]{1,0:T(1,128)}', space=vmem, size = 0x12000, scoped, tag = 'internal scratch']
  %s0 = inlined_call_operand.vmem [shape: f32[2,3,1664], index: 0, kind: input, shape index: {}]
  %s1 = inlined_call_operand.vmem [shape: f32[3,1], index: 1, kind: input, shape index: {}]
  %s2 = inlined_call_operand.vmem [shape: f32[3,1], index: 2, kind: input, shape index: {}]
  %s3 = inlined_call_operand.vmem [shape: f32[2,3,1664], index: 3, kind: output, shape index: {}]
  %s4 = sld [smem:[#allocation0]]
  $region45: #{tpu_custom_call.1} parent=0
    _
  %s6 = ssub.s32 1, %s4
  %s7 = scalar_select 0, %s6, %s4
  loop: start=0, step=1, limit=4
  $region2: #{tpu_custom_call.1} parent=0 // loop_pre_header
    _
  $region3: #{tpu_custom_call.1} parent=0 // loop_header
    %s9 = sphi 0, %s13
    %p10 = scmp.ge.s32.totalorder %s9, 4
    %s16 = sphi 0, %s28
    %s17 = sphi 0, %s24
    %s18 = sphi 0, %s16
    %s19 = sphi 0, %s17
    %s20 = sphi 0, %s18
    %s21 = sphi 0, %s19
    %s33 = sphi 0, %s35
    %s36 = sphi 0, %s33
    %s37 = sphi 0, %s36
    %s53 = sphi 0, %s37
    %s57 = sphi 0, %s57
    %s59 = sphi 0, %s57
    %s60 = sphi 0, %s59
    %s74 = sphi 0, %s60
    %s78 = sphi 0, %s78
    %s80 = sphi 0, %s78
    %s81 = sphi 0, %s80
    %s95 = sphi 0, %s81
    %s103 = sphi 0, %s105
    %s106 = sphi 0, %s103
    %s107 = sphi 0, %s106
    %s123 = sphi 0, %s107
  $region4: #{tpu_custom_call.1} parent=0 // loop_header_branch
    %12 = sbr.rel (%p10) target = $region8
  $region5: #{tpu_custom_call.1} parent=0 // loop_body
    %s14 = ssub.s32 %s9, 1
    %s15 = ssub.s32 %s9, 2
    %s22 = sadd.s32 1, %s17
    %p23 = scmp.ge.s32.totalorder %s22, 1
    %s24 = scalar_select %p23, 0, %s22
    %s25 = sadd.s32 1, %s16
    %s26 = scalar_select %p23, %s25, %s16
    %p27 = scmp.ge.s32.totalorder %s26, 2
    %s28 = scalar_select %p27, 0, %s26
    %s29 = ssub.s32 %s16, %s28
    %s30 = ssub.s32 %s17, %s24
    %s31 = sor.u32 %s29, %s30
    %p32 = scmp.eq.s32.totalorder %s31, 0
    %s34 = sadd.s32 %s33, 1
    %s35 = scalar_select %p32, %s33, %s34
    %p38 = pneg %p32
    %p39 = scmp.eq.s32.totalorder %s9, 1
    %p40 = por %p38, %p39
    %p41 = scmp.ne.s32.totalorder %s33, %s36
    %p42 = scmp.eq.s32.totalorder %s9, 0
    %p43 = por %p41, %p42
    %p44 = scmp.ne.s32.totalorder %s33, %s36
    %p45 = scmp.eq.s32.totalorder %s14, 1
    %p46 = por %p44, %p45
    %p47 = scmp.ne.s32.totalorder %s36, %s37
    %p48 = scmp.eq.s32.totalorder %s14, 0
    %p49 = por %p47, %p48
    %p50 = scmp.ne.s32.totalorder %s36, %s37
    %p51 = scmp.eq.s32.totalorder %s15, 1
    %p52 = por %p50, %p51
    %p54 = scmp.ne.s32.totalorder %s37, %s53
    %p55 = scmp.eq.s32.totalorder %s15, 0
    %p56 = por %p54, %p55
    %s58 = sadd.s32 %s57, 1
    %p61 = scmp.eq.s32.totalorder %s9, 1
    %p62 = scmp.ne.s32.totalorder %s57, %s59
    %p63 = scmp.eq.s32.totalorder %s9, 0
    %p64 = por %p62, %p63
    %p65 = scmp.ne.s32.totalorder %s57, %s59
    %p66 = scmp.eq.s32.totalorder %s14, 1
    %p67 = por %p65, %p66
    %p68 = scmp.ne.s32.totalorder %s59, %s60
    %p69 = scmp.eq.s32.totalorder %s14, 0
    %p70 = por %p68, %p69
    %p71 = scmp.ne.s32.totalorder %s59, %s60
    %p72 = scmp.eq.s32.totalorder %s15, 1
    %p73 = por %p71, %p72
    %p75 = scmp.ne.s32.totalorder %s60, %s74
    %p76 = scmp.eq.s32.totalorder %s15, 0
    %p77 = por %p75, %p76
    %s79 = sadd.s32 %s78, 1
    %p82 = scmp.eq.s32.totalorder %s9, 1
    %p83 = scmp.ne.s32.totalorder %s78, %s80
    %p84 = scmp.eq.s32.totalorder %s9, 0
    %p85 = por %p83, %p84
    %p86 = scmp.ne.s32.totalorder %s78, %s80
    %p87 = scmp.eq.s32.totalorder %s14, 1
    %p88 = por %p86, %p87
    %p89 = scmp.ne.s32.totalorder %s80, %s81
    %p90 = scmp.eq.s32.totalorder %s14, 0
    %p91 = por %p89, %p90
    %p92 = scmp.ne.s32.totalorder %s80, %s81
    %p93 = scmp.eq.s32.totalorder %s15, 1
    %p94 = por %p92, %p93
    %p96 = scmp.ne.s32.totalorder %s81, %s95
    %p97 = scmp.eq.s32.totalorder %s15, 0
    %p98 = por %p96, %p97
    %s99 = ssub.s32 %s16, %s28
    %s100 = ssub.s32 %s17, %s24
    %s101 = sor.u32 %s99, %s100
    %p102 = scmp.eq.s32.totalorder %s101, 0
    %s104 = sadd.s32 %s103, 1
    %s105 = scalar_select %p102, %s103, %s104
    %p108 = pneg %p102
    %p109 = scmp.eq.s32.totalorder %s9, 1
    %p110 = por %p108, %p109
    %p111 = scmp.ne.s32.totalorder %s103, %s106
    %p112 = scmp.eq.s32.totalorder %s9, 0
    %p113 = por %p111, %p112
    %p114 = scmp.ne.s32.totalorder %s103, %s106
    %p115 = scmp.eq.s32.totalorder %s14, 1
    %p116 = por %p114, %p115
    %p117 = scmp.ne.s32.totalorder %s106, %s107
    %p118 = scmp.eq.s32.totalorder %s14, 0
    %p119 = por %p117, %p118
    %p120 = scmp.ne.s32.totalorder %s106, %s107
    %p121 = scmp.eq.s32.totalorder %s15, 1
    %p122 = por %p120, %p121
    %p124 = scmp.ne.s32.totalorder %s107, %s123
    %p125 = scmp.eq.s32.totalorder %s15, 0
    %p126 = por %p124, %p125
    %p127 = scmp.le.s32.totalorder 1, %s9
    %p128 = scmp.lt.s32.totalorder %s9, 3
    %p129 = pnand %p127, %p128
    %p130 = pneg %p129
    // Predicated region
    $region9: #{tpu_custom_call.1} parent=5 // pred_check
      _
    $region10: #{tpu_custom_call.1} parent=5 // pred_check_branch
      %132 = sbr.rel (%p129) target = $region12
    $region11: #{tpu_custom_call.1} parent=5 // pred_region
      %s133 = ssub.s32 %s9, 1
      // Predicated region
      $region13: #{tpu_custom_call.1} parent=11 // pred_check
        %p134 = pneg %p70
      $region14: #{tpu_custom_call.1} parent=11 // pred_check_branch
        %136 = sbr.rel (%p134) target = $region16
      $region15: #{tpu_custom_call.1} parent=11 // pred_region
        _
      $region16: #{tpu_custom_call.1} parent=11 // pred_fallthru
        _
      // Predicated region
      $region17: #{tpu_custom_call.1} parent=11 // pred_check
        %p137 = pneg %p91
      $region18: #{tpu_custom_call.1} parent=11 // pred_check_branch
        %139 = sbr.rel (%p137) target = $region20
      $region19: #{tpu_custom_call.1} parent=11 // pred_region
        _
      $region20: #{tpu_custom_call.1} parent=11 // pred_fallthru
        _
    $region12: #{tpu_custom_call.1} parent=5 // pred_fallthru
      _
    %p140 = scmp.lt.s32.totalorder %s9, 2
    // Predicated region
    $region21: #{tpu_custom_call.1} parent=5 // pred_check
      %p141 = pneg %p140
    $region22: #{tpu_custom_call.1} parent=5 // pred_check_branch
      %143 = sbr.rel (%p141) target = $region24
    $region23: #{tpu_custom_call.1} parent=5 // pred_region
      // Predicated region
      $region25: #{tpu_custom_call.1} parent=23 // pred_check
        %p144 = pneg %p43
      $region26: #{tpu_custom_call.1} parent=23 // pred_check_branch
        %146 = sbr.rel (%p144) target = $region28
      $region27: #{tpu_custom_call.1} parent=23 // pred_region
        %s147 = smul.u32 13, %s17
        %p148 = scmp.lt.s32.totalorder %s16, 1
        %s149 = scalar_select %p148, %s16, 1
        %p150 = scmp.lt.s32.totalorder %s147, 12
        %s151 = scalar_select %p150, %s147, 12
        %s152 = smul.addr %s149, 13
        %s153 = sadd.s32 %s151, %s152
        %s154 = smul.addr %s153, 4
        %s155 = scalar_lea.vmem %s0, %s154
        %s156 = smul.u32 13, %s17
      $region28: #{tpu_custom_call.1} parent=23 // pred_fallthru
        _
    $region24: #{tpu_custom_call.1} parent=5 // pred_fallthru
      _
    %p157 = scmp.le.s32.totalorder 1, %s9
    %p158 = scmp.lt.s32.totalorder %s9, 3
    %p159 = pnand %p157, %p158
    %p160 = pneg %p159
    // Predicated region
    $region29: #{tpu_custom_call.1} parent=5 // pred_check
      _
    $region30: #{tpu_custom_call.1} parent=5 // pred_check_branch
      %162 = sbr.rel (%p159) target = $region32
    $region31: #{tpu_custom_call.1} parent=5 // pred_region
      %s163 = ssub.s32 %s9, 1
      %s164 = smul.u32 13, %s19
      %p165 = scmp.lt.s32.totalorder %s18, 1
      %s166 = scalar_select %p165, %s18, 1
      %p167 = scmp.lt.s32.totalorder %s164, 12
      %s168 = scalar_select %p167, %s164, 12
      %s169 = smul.addr %s166, 13
      %s170 = sadd.s32 %s168, %s169
      %s171 = smul.addr %s170, 4
      %s172 = scalar_lea.vmem %s0, %s171
      %p173 = pneg %p49
      %p174 = pneg %p46
      %p175 = pneg %p70
      %p176 = pneg %p67
      %p177 = pneg %p91
      %p178 = pneg %p88
      %p179 = pneg %p119
      %p180 = pneg %p116
      %s181 = smul.u32 13, %s19
      %p182 = scmp.lt.s32.totalorder %s18, 1
      %s183 = scalar_select %p182, %s18, 1
      %p184 = scmp.lt.s32.totalorder %s181, 12
      %s185 = scalar_select %p184, %s181, 12
      %s186 = smul.addr %s183, 13
      %s187 = sadd.s32 %s185, %s186
      %s188 = smul.addr %s187, 4
      %s189 = scalar_lea.vmem %s3, %s188
      %s190 = smul.u32 13, %s19
      %p191 = scmp.lt.s32.totalorder %s18, 1
      %s192 = scalar_select %p191, %s18, 1
      %p193 = scmp.lt.s32.totalorder %s190, 12
      %s194 = scalar_select %p193, %s190, 12
      %s195 = smul.addr %s192, 13
      %s196 = sadd.s32 %s194, %s195
      %s197 = smul.addr %s196, 4
      %s198 = scalar_lea.vmem %s0, %s197
      %s199 = smul.u32 13, %s19
      %s200 = smul.u32 13, %s19
      %p201 = scmp.lt.s32.totalorder %s18, 1
      %s202 = scalar_select %p201, %s18, 1
      %p203 = scmp.lt.s32.totalorder %s200, 12
      %s204 = scalar_select %p203, %s200, 12
      %s205 = smul.addr %s202, 13
      %s206 = sadd.s32 %s204, %s205
      %s207 = smul.addr %s206, 4
      %s208 = scalar_lea.vmem %s3, %s207
      %s209 = smul.u32 13, %s19
      %v210 = vld [vmem:[%s198] sm:$0x77]
      %v211 = vld [vmem:[%s198 + $0x8] sm:$0x77]
      %v212 = vld [vmem:[%s198 + $0x10] sm:$0x77]
      %v213 = vld [vmem:[%s198 + $0x18] sm:$0x77]
      %v214 = vld [vmem:[%s198 + $0x20] sm:$0x77]
      %v215 = vld [vmem:[%s198 + $0x28] sm:$0x77]
      %v216 = vld [vmem:[%s198 + $0x30] sm:$0x7]
      %v217 = vld [vmem:[%s1] sm:$0x7]
      %219 = vset.pattern.permute.xlu0 0
      %220 = vperm.xlu0 %219, %v217
      %v221 = vpop.permute.xlu0 %220
      %v223 = vunpack.c.l.s4 839922192
      %v224 = vunpack.c.0.s8 %v223
      %v225 = vlaneseq
      %v226 = vshrl.u32 %v225, 7
      %v227 = vsub.s32 %v224, %v226
      %v228 = vrot.slane %v221, %v227
      %v230 = vmul.f32 %v210, %v228
      %v231 = vmul.f32 %v211, %v228
      %v232 = vmul.f32 %v212, %v228
      %v233 = vmul.f32 %v213, %v228
      %v234 = vmul.f32 %v214, %v228
      %v235 = vmul.f32 %v215, %v228
      %v236 = vmul.f32 %v216, %v228
      %v237 = vld [vmem:[%s2] sm:$0x7]
      %239 = vset.pattern.permute.xlu0 0
      %240 = vperm.xlu0 %239, %v237
      %v241 = vpop.permute.xlu0 %240
      %v243 = vunpack.c.l.s4 839922192
      %v244 = vunpack.c.0.s8 %v243
      %v245 = vlaneseq
      %v246 = vshrl.u32 %v245, 7
      %v247 = vsub.s32 %v244, %v246
      %v248 = vrot.slane %v241, %v247
      %v250 = vsub.f32 %v230, %v248
      %v251 = vsub.f32 %v231, %v248
      %v252 = vsub.f32 %v232, %v248
      %v253 = vsub.f32 %v233, %v248
      %v254 = vsub.f32 %v234, %v248
      %v255 = vsub.f32 %v235, %v248
      %v256 = vsub.f32 %v236, %v248
      %257 = vst [vmem:[%s208] sm:$0x77] %v250
      %258 = vst [vmem:[%s208 + $0x8] sm:$0x77] %v251
      %259 = vst [vmem:[%s208 + $0x10] sm:$0x77] %v252
      %260 = vst [vmem:[%s208 + $0x18] sm:$0x77] %v253
      %261 = vst [vmem:[%s208 + $0x20] sm:$0x77] %v254
      %262 = vst [vmem:[%s208 + $0x28] sm:$0x77] %v255
      %263 = vst [vmem:[%s208 + $0x30] sm:$0x7] %v256
      %s264 = smul.u32 13, %s19
      %p265 = scmp.lt.s32.totalorder %s18, 1
      %s266 = scalar_select %p265, %s18, 1
      %p267 = scmp.lt.s32.totalorder %s264, 12
      %s268 = scalar_select %p267, %s264, 12
      %s269 = smul.addr %s266, 13
      %s270 = sadd.s32 %s268, %s269
      %s271 = smul.addr %s270, 4
      %s272 = scalar_lea.vmem %s3, %s271
      // Predicated region
      $region33: #{tpu_custom_call.1} parent=31 // pred_check
        %p273 = pneg %p116
      $region34: #{tpu_custom_call.1} parent=31 // pred_check_branch
        %275 = sbr.rel (%p273) target = $region36
      $region35: #{tpu_custom_call.1} parent=31 // pred_region
        %s276 = smul.u32 13, %s19
      $region36: #{tpu_custom_call.1} parent=31 // pred_fallthru
        _
    $region32: #{tpu_custom_call.1} parent=5 // pred_fallthru
      _
    %p277 = scmp.le.s32.totalorder 2, %s9
    // Predicated region
    $region37: #{tpu_custom_call.1} parent=5 // pred_check
      %p278 = pneg %p277
    $region38: #{tpu_custom_call.1} parent=5 // pred_check_branch
      %280 = sbr.rel (%p278) target = $region40
    $region39: #{tpu_custom_call.1} parent=5 // pred_region
      %s281 = ssub.s32 %s9, 2
      // Predicated region
      $region41: #{tpu_custom_call.1} parent=39 // pred_check
        %p282 = pneg %p122
      $region42: #{tpu_custom_call.1} parent=39 // pred_check_branch
        %284 = sbr.rel (%p282) target = $region44
      $region43: #{tpu_custom_call.1} parent=39 // pred_region
        %s285 = smul.u32 13, %s21
        %p286 = scmp.lt.s32.totalorder %s20, 1
        %s287 = scalar_select %p286, %s20, 1
        %p288 = scmp.lt.s32.totalorder %s285, 12
        %s289 = scalar_select %p288, %s285, 12
        %s290 = smul.addr %s287, 13
        %s291 = sadd.s32 %s289, %s290
        %s292 = smul.addr %s291, 4
        %s293 = scalar_lea.vmem %s3, %s292
      $region44: #{tpu_custom_call.1} parent=39 // pred_fallthru
        _
    $region40: #{tpu_custom_call.1} parent=5 // pred_fallthru
      _
  $region6: #{tpu_custom_call.1} parent=0 // loop_footer
    %s13 = sadd.s32 1, %s9
  $region7: #{tpu_custom_call.1} parent=0 // loop_footer_branch
    %8 = sbr.rel target = $region3
  $region8: #{tpu_custom_call.1} parent=0 // loop_exit
    _

</llo_original>
